<compile_context>
chip_gen: v6e
topology: v6e:2x2x1
jax: 0.10.0
libtpu: 0.0.40
codegen_flags: <defaults>
</compile_context>

<pallas_src>
import math

import jax
import jax.numpy as jnp
from jax.experimental import pallas as pl
from jax.experimental.pallas import tpu as pltpu


def _dma_copy_kernel(x_hbm, o_hbm, sem):
    # Single HBM -> HBM DMA of the whole (re-slabbed) array.  No VMEM staging.
    cp = pltpu.make_async_copy(x_hbm, o_hbm, sem)
    cp.start()
    cp.wait()


_LANE = 128
_SMALL_BYTES = 1 << 20  # below this, a metadata-only reshape is strictly better


def _best_slab(total: int):
    """Free (metadata-only) 2D re-slab (rows, width) of `total` elements.

    Prefers a wide, lane-dense last dim (multiple of 128) so each DMA row
    segment is large; falls back to a single row (still one maximal
    contiguous segment) when no 128-multiple divides `total`.
    """
    for width in (8192, 4096, 2048, 1024, 512, 256, _LANE):
        if total % width == 0:
            return total // width, width
    return 1, total


def flatten(x: jax.Array, *, use_kernel=None) -> jax.Array:
    """Pallas equivalent of torch `x.view(x.size(0), -1)`."""
    n = x.shape[0]
    flat = math.prod(x.shape[1:]) if x.ndim > 1 else 1
    total = n * flat
    itemsize = jnp.dtype(x.dtype).itemsize
    nbytes = total * itemsize

    if use_kernel is None:
        use_kernel = nbytes >= _SMALL_BYTES
    if not use_kernel or total == 0:
        # Flatten of a contiguous array is a free, metadata-only reshape.
        return x.reshape(n, flat)

    rows, width = _best_slab(total)
    x_slab = x.reshape(rows, width)  # metadata-only re-slab for large DMA segments

    cost = pl.CostEstimate(
        flops=0,
        transcendentals=0,
        bytes_accessed=2 * nbytes,  # read + write
    )

    out_slab = pl.pallas_call(
        _dma_copy_kernel,
        out_shape=jax.ShapeDtypeStruct((rows, width), x.dtype),
        in_specs=[pl.BlockSpec(memory_space=pl.ANY)],   # raw HBM ref, no auto-DMA
        out_specs=pl.BlockSpec(memory_space=pl.ANY),    # raw HBM ref, written by DMA
        scratch_shapes=[pltpu.SemaphoreType.DMA(())],
        cost_estimate=cost,
    )(x_slab)

    return out_slab.reshape(n, flat)  # metadata-only


if __name__ == "__main__":
    key = jax.random.PRNGKey(0)
    # Small NCHW input consistent with a conv-net flatten:
    # (batch=2, C=4, H=16, W=16) -> (2, 1024)
    x = jax.random.normal(key, (2, 4, 16, 16), dtype=jnp.float32)

    # Force the Pallas kernel even though the input is tiny.
    out = flatten(x, use_kernel=True)
    out = jax.block_until_ready(out)

    # Reference check against plain JAX reshape (== torch .view(N, -1)).
    ref = x.reshape(x.shape[0], -1)
    assert out.shape == (2, 4 * 16 * 16), out.shape
    assert out.dtype == x.dtype
    assert jnp.array_equal(out, ref)

    # Default (auto) path for tiny inputs: free metadata-only reshape.
    out_auto = jax.block_until_ready(flatten(x))
    assert out_auto.shape == ref.shape
    assert jnp.array_equal(out_auto, ref)

    print("KERNEL_OK")
</pallas_src>

<mosaic_0001>
module attributes {stable_mosaic.version = 11 : i64} {
  func.func @_dma_copy_kernel(%arg0: memref<1x2048xf32, #tpu.memory_space<any>>, %arg1: memref<1x2048xf32, #tpu.memory_space<any>>, %arg2: memref<!tpu.dma_semaphore, #tpu.memory_space<semaphore_mem>>) attributes {dimension_semantics = [], scalar_prefetch = 0 : i64, scratch_operands = 1 : i64, tpu.core_type = #tpu.core_type<tc>} {
    tpu.enqueue_dma source(%arg0 : memref<1x2048xf32, #tpu.memory_space<any>>) target(%arg1 : memref<1x2048xf32, #tpu.memory_space<any>>) target_semaphore(%arg2 : memref<!tpu.dma_semaphore, #tpu.memory_space<semaphore_mem>>)
    tpu.wait_dma2 semaphore(%arg2 : memref<!tpu.dma_semaphore, #tpu.memory_space<semaphore_mem>>) src(%arg0 : memref<1x2048xf32, #tpu.memory_space<any>>) dst(%arg1 : memref<1x2048xf32, #tpu.memory_space<any>>)
    return
  }
}

</mosaic_0001>

<llo_original>
// kernel: tpu_custom_call.1
$region0: #{tpu_custom_call.1}
  #allocation0 [shape = 'u32[]', space=smem, size = 0x4, offset = 0x4, fixed_abs, tag = 'smem constant byte address 0x4 - core index']
  #allocation1 [shape = 'u32[144,128]{1,0:T(1,128)}', space=vmem, size = 0x12000, scoped, tag = 'internal scratch']
  #allocation2 [shape = 's32[1]{0}', space=sflag, size = 0x4, scoped, tag = 'scratch operand']
  #allocation3 [shape = 's32[]', space=sflag, size = 0x4, offset = 0, fixed_abs, tag = 'sflag constant byte address 0x0 - dummy sync flag']
  #allocation4 [shape = 'u32[0]{0}', space=smem, size = 0, offset = 0, fixed_abs, tag = 'smem constant byte address 0x0 - null']
  %s0 = inlined_call_operand.hbm [shape: f32[1,2048], index: 0, kind: input, shape index: {}]
  %s1 = inlined_call_operand.hbm [shape: f32[1,2048], index: 1, kind: output, shape index: {}]
  %s2 = sld [smem:[#allocation0]]
  $region2: #{tpu_custom_call.1} parent=0
    _
  %s4 = ssub.s32 1, %s2
  %s5 = scalar_select 0, %s4, %s2
  %s7 = sshll.u32 1, 14
  %s8 = sxor.u32 4294967295, %s7
  %12 = dma.general %s0, 256, %s1, [#allocation2], 131072, [#allocation4], 0, 0
  %s13 = smul.u32 1, 16
  %s14 = sshll.u32 %s13, 4
  %15 = dma.done [#allocation2], %s14
  %16 = vsyncmov [#allocation2]
  %s17 = vpop.sfrf %16
  %p18 = scmp.eq.s32.totalorder %s17, 0
  %p19 = pneg %p18
  %21 = shalt.err (%p19)

</llo_original>
